<compile_context>
chip_gen: v5e
topology: v5e:2x2
jax: 0.10.0
libtpu: 0.0.40
codegen_flags: <defaults>
</compile_context>

<pallas_src>
import math

import jax
import jax.numpy as jnp
from jax.experimental import pallas as pl
from jax.experimental.pallas import tpu as pltpu


# Lane-width candidates (largest first). Last dim of the block will be one of
# these, keeping stores lane-dense (multiple of 128).
_LANE_CANDIDATES = (4096, 2048, 1024, 512, 256, 128)

# Per-tile byte budget: in + out specs, each double-buffered => ~4 live tiles.
# 4 * 8 MiB = 32 MiB fits v7x's 64 MiB VMEM with headroom.
_MAX_TILE_BYTES = 8 * 1024 * 1024

# Scoped VMEM limit: above the 16/32 MiB defaults, below v7x's 64 MiB physical.
_VMEM_LIMIT_BYTES = 48 * 1024 * 1024


def _copy_kernel(x_ref, o_ref):
    # Identity hot path: load the lane-dense tile and store it back.
    o_ref[...] = x_ref[...]


@jax.jit
def decoder_forward(embedded_inputs: jax.Array) -> jax.Array:
    """Pallas 'Decoder' forward: identity pass-through of embedded_inputs."""
    orig_shape = embedded_inputs.shape
    dtype = embedded_inputs.dtype
    total = math.prod(orig_shape)
    itemsize = jnp.dtype(dtype).itemsize

    # Pick the largest lane width (multiple of 128) that divides the element
    # count, so the flattened view (rows, lane) is lane-dense.
    lane = next((c for c in _LANE_CANDIDATES if total % c == 0), None)

    if lane is None:
        # Odd element count: whole-array single-block copy (small shapes only).
        return pl.pallas_call(
            _copy_kernel,
            out_shape=jax.ShapeDtypeStruct(orig_shape, dtype),
            input_output_aliases={0: 0},
        )(embedded_inputs)

    rows = total // lane
    row_bytes = lane * itemsize
    budget_rows = max(1, _MAX_TILE_BYTES // row_bytes)

    if rows <= budget_rows:
        # Single row-tile covering the full (sub-lane) extent.
        tile_rows = rows
    else:
        # Largest multiple-of-8 row count under the VMEM budget.
        tile_rows = max(8, (budget_rows // 8) * 8)

    grid = (pl.cdiv(rows, tile_rows),)

    # Lane-dense flat view; reshape is layout plumbing in the wrapper.
    x2d = embedded_inputs.reshape(rows, lane)

    out2d = pl.pallas_call(
        _copy_kernel,
        out_shape=jax.ShapeDtypeStruct((rows, lane), dtype),
        grid=grid,
        in_specs=[pl.BlockSpec((tile_rows, lane), lambda i: (i, 0))],
        out_specs=pl.BlockSpec((tile_rows, lane), lambda i: (i, 0)),
        # Output aliases the input buffer: a donating caller pays no extra
        # HBM allocation/write for this zero-FLOP op.
        input_output_aliases={0: 0},
        compiler_params=pltpu.CompilerParams(
            dimension_semantics=("parallel",),
            vmem_limit_bytes=_VMEM_LIMIT_BYTES,
        ),
    )(x2d)

    return out2d.reshape(orig_shape)


if __name__ == "__main__":
    # Deterministic small example: batch=2, seq=8, hidden=32.
    key = jax.random.PRNGKey(0)
    embedded_inputs = jax.random.normal(key, (2, 8, 32), dtype=jnp.float32)

    out = decoder_forward(embedded_inputs)
    out = jax.block_until_ready(out)

    # Sanity check against the (identity) reference semantics.
    assert out.shape == embedded_inputs.shape
    assert out.dtype == embedded_inputs.dtype
    assert bool(jnp.allclose(out, embedded_inputs))

    print("KERNEL_OK")
</pallas_src>

<mosaic_0001>
module attributes {stable_mosaic.version = 11 : i64} {
  func.func @_copy_kernel(%arg0: i32, %arg1: memref<1x512xf32, #tpu.memory_space<vmem>>, %arg2: memref<1x512xf32, #tpu.memory_space<vmem>>) attributes {dimension_semantics = [#tpu.dimension_semantics<parallel>], iteration_bounds = array<i64: 1>, scalar_prefetch = 0 : i64, scratch_operands = 0 : i64, tpu.core_type = #tpu.core_type<tc>, window_params = [{transform_indices = @transform_0, window_bounds = array<i64: 1, 512>}, {transform_indices = @transform_1, window_bounds = array<i64: 1, 512>}]} {
    %c0 = arith.constant 0 : index
    %c0_0 = arith.constant 0 : index
    %0 = vector.load %arg1[%c0, %c0_0] : memref<1x512xf32, #tpu.memory_space<vmem>>, vector<1x512xf32>
    %c0_1 = arith.constant 0 : index
    %c0_2 = arith.constant 0 : index
    %1 = vector.load %arg2[%c0_1, %c0_2] : memref<1x512xf32, #tpu.memory_space<vmem>>, vector<1x512xf32>
    tpu.vector_store %arg2[%c0_1, %c0_2], %0 {strides = array<i32>} : memref<1x512xf32, #tpu.memory_space<vmem>>, vector<1x512xf32>,
    return
  }
  func.func @transform_0(%arg0: i32) -> (i32, i32) {
    %c0_i32 = arith.constant 0 : i32
    %c0_i32_0 = arith.constant 0 : i32
    return %arg0, %c0_i32 : i32, i32
  }
  func.func @transform_1(%arg0: i32) -> (i32, i32) {
    %c0_i32 = arith.constant 0 : i32
    %c0_i32_0 = arith.constant 0 : i32
    return %arg0, %c0_i32 : i32, i32
  }
}

</mosaic_0001>

<llo_original>
// kernel: decoder_forward.1
$region0: #{decoder_forward.1}
  #allocation0 [shape = 'u32[]', space=smem, size = 0x4, offset = 0x4, fixed_abs, tag = 'smem constant byte address 0x4 - core index']
  #allocation1 [shape = 'u32[72,128]{1,0:T(1,128)}', space=vmem, size = 0x9000, scoped, tag = 'internal scratch']
  %s0 = inlined_call_operand.vmem [shape: f32[1,512], index: 0, kind: input, shape index: {}, may-alias: {0,1}]
  %s1 = inlined_call_operand.vmem [shape: f32[1,512], index: 1, kind: output, shape index: {}, may-alias: {0,1}]
  %s2 = sld [smem:[#allocation0]]
  $region14: #{decoder_forward.1} parent=0
    _
  %s4 = ssub.s32 1, %s2
  %s5 = scalar_select 0, %s4, %s2
  // Predicated region
  $region2: #{decoder_forward.1} parent=0 // pred_check
    _
  $region3: #{decoder_forward.1} parent=0 // pred_check_branch
    %7 = sbr.rel (0) target = $region5
  $region4: #{decoder_forward.1} parent=0 // pred_region
    _
  $region5: #{decoder_forward.1} parent=0 // pred_fallthru
    _
  %v8 = vld [vmem:[%s0] sm:$0xf]
  %v9 = vlaneseq
  %vm10 = vcmp.ge.s32.totalorder %v9, 0
  %vm11 = vcmp.lt.s32.totalorder %v9, 512
  %vm12 = vmand %vm10, %vm11
  %13 = vst.msk [vmem:[%s1] sm:$0xf] %vm12, %v8
  // Predicated region
  $region6: #{decoder_forward.1} parent=0 // pred_check
    _
  $region7: #{decoder_forward.1} parent=0 // pred_check_branch
    %15 = sbr.rel (0) target = $region9
  $region8: #{decoder_forward.1} parent=0 // pred_region
    _
  $region9: #{decoder_forward.1} parent=0 // pred_fallthru
    _
  // Predicated region
  $region10: #{decoder_forward.1} parent=0 // pred_check
    _
  $region11: #{decoder_forward.1} parent=0 // pred_check_branch
    %17 = sbr.rel (0) target = $region13
  $region12: #{decoder_forward.1} parent=0 // pred_region
    _
  $region13: #{decoder_forward.1} parent=0 // pred_fallthru
    _

</llo_original>
